<compile_context>
chip_gen: v6e
topology: v6e:2x2x1
jax: 0.10.0
libtpu: 0.0.40
codegen_flags: <defaults>
</compile_context>

<pallas_src>
import functools

import jax
import jax.numpy as jnp
from jax.experimental import pallas as pl
from jax.experimental.pallas import tpu as pltpu


def _sep_norm_kernel(x_ref, aw_ref, ab_ref, pw_ref, pb_ref, o_ref,
                     *, num_aux_tokens, eps):
    # x_ref / o_ref : (Bb, Sb, D) tile
    # aw_ref/ab_ref : (A, D)  aux-norm affine params (reshaped from (A*D,))
    # pw_ref/pb_ref : (1, D)  patch-norm affine params
    a = num_aux_tokens

    # Single aligned full-tile load; upcast to f32 for the statistics.
    x = x_ref[...].astype(jnp.float32)                      # (Bb, Sb, D)

    # ---- per-token LayerNorm over D on ALL rows of the tile (aligned) -----
    # Two-pass (centered) variance for numerical parity with the reference.
    mean = jnp.mean(x, axis=-1, keepdims=True)              # (Bb, Sb, 1)
    centered = x - mean
    var = jnp.mean(centered * centered, axis=-1, keepdims=True)
    inv = jax.lax.rsqrt(var + eps)
    pw = pw_ref[...].astype(jnp.float32)                    # (1, D)
    pb = pb_ref[...].astype(jnp.float32)                    # (1, D)

    # One aligned full-tile store for the bulk of the data.
    o_ref[...] = (centered * inv * pw + pb).astype(o_ref.dtype)

    # ---- aux tokens: LayerNorm over flattened (A*D), per batch row --------
    # The aux rows live entirely in the first sequence tile (Sb >= A).
    @pl.when(pl.program_id(1) == 0)
    def _():
        aux = x[:, :a, :]                                   # (Bb, A, D)
        aux_mean = jnp.mean(aux, axis=(1, 2), keepdims=True)
        aux_c = aux - aux_mean
        aux_var = jnp.mean(aux_c * aux_c, axis=(1, 2), keepdims=True)
        aux_hat = aux_c * jax.lax.rsqrt(aux_var + eps)
        aw = aw_ref[...].astype(jnp.float32)                # (A, D)
        ab = ab_ref[...].astype(jnp.float32)                # (A, D)
        # Small masked overwrite of just the A aux rows.
        o_ref[:, :a, :] = (aux_hat * aw + ab).astype(o_ref.dtype)


def _vmem_budget():
    """(per-step tile byte budget, scoped vmem_limit_bytes) for this device."""
    try:
        cap = int(pltpu.get_tpu_info().vmem_capacity_bytes)
    except Exception:
        cap = 64 << 20  # conservative fallback = v7x per-TensorCore VMEM
    # Per-step footprint budget (double-buffered IO + f32 temps) with
    # headroom: ~48 MiB on 128 MiB parts (v5e/v6e), ~35 MiB on v7x (64 MiB).
    budget = min(max(int(cap * 0.55), 16 << 20), 48 << 20)
    # Raise the compiler's scoped-VMEM limit above the 16/32 MiB default,
    # but stay well under physical capacity.
    vmem_limit = min(int(cap * 0.9), budget + (16 << 20))
    return budget, vmem_limit


def _pick_tiles(B, S, D, A, itemsize, budget):
    """Choose (Bb, Sb) tile sizes.

    Byte accounting per tile element: 2x input + 2x output double buffers
    (itemsize each) plus ~2 live full-tile f32 intermediates in the kernel.
    """
    bytes_per_elem = 4 * itemsize + 8
    pack = max(8, 32 // max(itemsize, 1))      # sublane pack: 8 f32, 16 bf16
    min_sb = -(-A // pack) * pack              # Sb must cover all aux rows
    row_bytes = bytes_per_elem * S * D         # one full-sequence row

    if row_bytes <= budget:
        # Full sequence per tile; tile over batch.
        Sb = S
        Bb = max(1, min(B, budget // row_bytes))
        if B >= 2:
            # Guarantee >= 2 grid steps so v7x's two TensorCores share work.
            Bb = min(Bb, -(-B // 2))
        elif S >= 2 * pack:
            # B == 1: split the sequence instead to get >= 2 grid steps.
            Sb = max(pack, ((-(-S // 2)) // pack) * pack)
            Sb = min(max(Sb, min_sb), S)
        return int(Bb), int(Sb)

    # Very large S*D: sequence tiling (Sb a multiple of the sublane pack,
    # at least A so the aux rows sit entirely in the first seq tile).
    sb_fit = budget // (bytes_per_elem * D)
    Sb = (sb_fit // pack) * pack
    Sb = min(max(Sb, min_sb, pack), S)
    return 1, int(Sb)


def vit_seperate_norm(x, aux_weight, aux_bias, patch_weight, patch_bias,
                      *, num_aux_tokens, eps=1e-6):
    """x: (B, S, D).  aux_* : (A*D,).  patch_* : (D,)."""
    B, S, D = x.shape
    A = num_aux_tokens
    assert 0 < A <= S

    aw = aux_weight.reshape(A, D).astype(jnp.float32)
    ab = aux_bias.reshape(A, D).astype(jnp.float32)
    pw = patch_weight.reshape(1, D).astype(jnp.float32)
    pb = patch_bias.reshape(1, D).astype(jnp.float32)

    budget, vmem_limit = _vmem_budget()
    Bb, Sb = _pick_tiles(B, S, D, A, x.dtype.itemsize, budget)
    n_b = pl.cdiv(B, Bb)
    n_s = pl.cdiv(S, Sb)

    kernel = functools.partial(_sep_norm_kernel,
                               num_aux_tokens=A, eps=float(eps))

    return pl.pallas_call(
        kernel,
        out_shape=jax.ShapeDtypeStruct((B, S, D), x.dtype),
        grid_spec=pltpu.PrefetchScalarGridSpec(
            num_scalar_prefetch=0,
            grid=(n_b, n_s),
            in_specs=[
                pl.BlockSpec((Bb, Sb, D), lambda b, s: (b, s, 0)),  # x tile
                pl.BlockSpec((A, D), lambda b, s: (0, 0)),          # aux w
                pl.BlockSpec((A, D), lambda b, s: (0, 0)),          # aux b
                pl.BlockSpec((1, D), lambda b, s: (0, 0)),          # patch w
                pl.BlockSpec((1, D), lambda b, s: (0, 0)),          # patch b
            ],
            out_specs=pl.BlockSpec((Bb, Sb, D), lambda b, s: (b, s, 0)),
        ),
        compiler_params=pltpu.CompilerParams(
            dimension_semantics=("parallel", "parallel"),
            vmem_limit_bytes=int(vmem_limit)),
    )(x, aw, ab, pw, pb)


def _reference(x, aux_weight, aux_bias, patch_weight, patch_bias,
               *, num_aux_tokens, eps=1e-6):
    x = x.astype(jnp.float32)
    B, S, D = x.shape
    A = num_aux_tokens
    aux = x[:, :A, :].reshape(B, A * D)
    m = aux.mean(axis=-1, keepdims=True)
    v = ((aux - m) ** 2).mean(axis=-1, keepdims=True)
    aux_n = (aux - m) / jnp.sqrt(v + eps) * aux_weight + aux_bias
    aux_n = aux_n.reshape(B, A, D)

    patch = x[:, A:, :]
    pm = patch.mean(axis=-1, keepdims=True)
    pv = ((patch - pm) ** 2).mean(axis=-1, keepdims=True)
    patch_n = (patch - pm) / jnp.sqrt(pv + eps) * patch_weight + patch_bias
    return jnp.concatenate([aux_n, patch_n], axis=1)


if __name__ == "__main__":
    B, S, D = 2, 8, 32
    NUM_AUX = 2
    EPS = 1e-6

    key = jax.random.PRNGKey(0)
    kx, kaw, kab, kpw, kpb = jax.random.split(key, 5)

    x = jax.random.normal(kx, (B, S, D), dtype=jnp.float32)
    # Affine params perturbed around LayerNorm's default weight=1 / bias=0
    # init so the affine path is actually exercised.
    aux_weight = 1.0 + 0.1 * jax.random.normal(kaw, (NUM_AUX * D,), jnp.float32)
    aux_bias = 0.1 * jax.random.normal(kab, (NUM_AUX * D,), jnp.float32)
    patch_weight = 1.0 + 0.1 * jax.random.normal(kpw, (D,), jnp.float32)
    patch_bias = 0.1 * jax.random.normal(kpb, (D,), jnp.float32)

    out = vit_seperate_norm(x, aux_weight, aux_bias, patch_weight, patch_bias,
                            num_aux_tokens=NUM_AUX, eps=EPS)
    out = jax.block_until_ready(out)

    ref = _reference(x, aux_weight, aux_bias, patch_weight, patch_bias,
                     num_aux_tokens=NUM_AUX, eps=EPS)
    assert out.shape == (B, S, D)
    assert jnp.allclose(out, ref, atol=1e-5, rtol=1e-5), "mismatch vs reference"

    print("KERNEL_OK")
</pallas_src>

<mosaic_0001>
module attributes {stable_mosaic.version = 11 : i64} {
  func.func @_sep_norm_kernel(%arg0: i32, %arg1: i32, %arg2: memref<1x8x32xf32, #tpu.memory_space<vmem>>, %arg3: memref<2x32xf32, #tpu.memory_space<vmem>>, %arg4: memref<2x32xf32, #tpu.memory_space<vmem>>, %arg5: memref<1x32xf32, #tpu.memory_space<vmem>>, %arg6: memref<1x32xf32, #tpu.memory_space<vmem>>, %arg7: memref<1x8x32xf32, #tpu.memory_space<vmem>>) attributes {dimension_semantics = [#tpu.dimension_semantics<parallel>, #tpu.dimension_semantics<parallel>], iteration_bounds = array<i64: 2, 1>, scalar_prefetch = 0 : i64, scratch_operands = 0 : i64, tpu.core_type = #tpu.core_type<tc>, window_params = [{transform_indices = @transform_0, window_bounds = array<i64: 1, 8, 32>}, {pipeline_mode = #tpu.pipeline_mode<synchronous>, transform_indices = @transform_1, window_bounds = array<i64: 2, 32>}, {pipeline_mode = #tpu.pipeline_mode<synchronous>, transform_indices = @transform_2, window_bounds = array<i64: 2, 32>}, {pipeline_mode = #tpu.pipeline_mode<synchronous>, transform_indices = @transform_3, window_bounds = array<i64: 1, 32>}, {pipeline_mode = #tpu.pipeline_mode<synchronous>, transform_indices = @transform_4, window_bounds = array<i64: 1, 32>}, {transform_indices = @transform_5, window_bounds = array<i64: 1, 8, 32>}]} {
    %c0 = arith.constant 0 : index
    %c0_0 = arith.constant 0 : index
    %c0_1 = arith.constant 0 : index
    %0 = vector.load %arg2[%c0, %c0_0, %c0_1] : memref<1x8x32xf32, #tpu.memory_space<vmem>>, vector<1x8x32xf32>
    %cst = arith.constant dense<0.000000e+00> : vector<1x8xf32>
    %1 = vector.multi_reduction <add>, %0, %cst [2] : vector<1x8x32xf32> to vector<1x8xf32>
    %2 = vector.shape_cast %1 : vector<1x8xf32> to vector<1x8x1xf32>
    %cst_2 = arith.constant 3.200000e+01 : f32
    %3 = vector.broadcast %cst_2 : f32 to vector<1x8x1xf32>
    %4 = arith.divf %2, %3 : vector<1x8x1xf32>
    %5 = vector.broadcast %4 : vector<1x8x1xf32> to vector<1x8x32xf32>
    %6 = arith.subf %0, %5 : vector<1x8x32xf32>
    %7 = arith.mulf %6, %6 : vector<1x8x32xf32>
    %cst_3 = arith.constant dense<0.000000e+00> : vector<1x8xf32>
    %8 = vector.multi_reduction <add>, %7, %cst_3 [2] : vector<1x8x32xf32> to vector<1x8xf32>
    %9 = vector.shape_cast %8 : vector<1x8xf32> to vector<1x8x1xf32>
    %cst_4 = arith.constant 3.200000e+01 : f32
    %10 = vector.broadcast %cst_4 : f32 to vector<1x8x1xf32>
    %11 = arith.divf %9, %10 : vector<1x8x1xf32>
    %cst_5 = arith.constant 9.99999997E-7 : f32
    %12 = vector.broadcast %cst_5 : f32 to vector<1x8x1xf32>
    %13 = arith.addf %11, %12 : vector<1x8x1xf32>
    %14 = math.rsqrt %13 : vector<1x8x1xf32>
    %c0_6 = arith.constant 0 : index
    %c0_7 = arith.constant 0 : index
    %15 = vector.load %arg5[%c0_6, %c0_7] : memref<1x32xf32, #tpu.memory_space<vmem>>, vector<1x32xf32>
    %c0_8 = arith.constant 0 : index
    %c0_9 = arith.constant 0 : index
    %16 = vector.load %arg6[%c0_8, %c0_9] : memref<1x32xf32, #tpu.memory_space<vmem>>, vector<1x32xf32>
    %17 = vector.broadcast %14 : vector<1x8x1xf32> to vector<1x8x32xf32>
    %18 = arith.mulf %6, %17 : vector<1x8x32xf32>
    %19 = vector.shape_cast %15 : vector<1x32xf32> to vector<1x1x32xf32>
    %20 = vector.broadcast %19 : vector<1x1x32xf32> to vector<1x8x32xf32>
    %21 = arith.mulf %18, %20 : vector<1x8x32xf32>
    %22 = vector.shape_cast %16 : vector<1x32xf32> to vector<1x1x32xf32>
    %23 = vector.broadcast %22 : vector<1x1x32xf32> to vector<1x8x32xf32>
    %24 = arith.addf %21, %23 : vector<1x8x32xf32>
    %c0_10 = arith.constant 0 : index
    %c0_11 = arith.constant 0 : index
    %c0_12 = arith.constant 0 : index
    %25 = vector.load %arg7[%c0_10, %c0_11, %c0_12] : memref<1x8x32xf32, #tpu.memory_space<vmem>>, vector<1x8x32xf32>
    tpu.vector_store %arg7[%c0_10, %c0_11, %c0_12], %24 {strides = array<i32>} : memref<1x8x32xf32, #tpu.memory_space<vmem>>, vector<1x8x32xf32>,
    %c0_i32 = arith.constant 0 : i32
    %26 = arith.cmpi eq, %arg1, %c0_i32 : i32
    %27 = arith.extui %26 : i1 to i32
    %c0_i32_13 = arith.constant 0 : i32
    %28 = arith.cmpi ne, %27, %c0_i32_13 : i32
    scf.if %28 {
      %29 = vector.extract_strided_slice %0 {offsets = [0, 0, 0], sizes = [1, 2, 32], strides = [1, 1, 1]} : vector<1x8x32xf32> to vector<1x2x32xf32>
      %cst_14 = arith.constant dense<0.000000e+00> : vector<1xf32>
      %30 = vector.multi_reduction <add>, %29, %cst_14 [1, 2] : vector<1x2x32xf32> to vector<1xf32>
      %31 = vector.shape_cast %30 : vector<1xf32> to vector<1x1x1xf32>
      %cst_15 = arith.constant 6.400000e+01 : f32
      %32 = vector.broadcast %cst_15 : f32 to vector<1x1x1xf32>
      %33 = arith.divf %31, %32 : vector<1x1x1xf32>
      %34 = vector.broadcast %33 : vector<1x1x1xf32> to vector<1x2x32xf32>
      %35 = arith.subf %29, %34 : vector<1x2x32xf32>
      %36 = arith.mulf %35, %35 : vector<1x2x32xf32>
      %cst_16 = arith.constant dense<0.000000e+00> : vector<1xf32>
      %37 = vector.multi_reduction <add>, %36, %cst_16 [1, 2] : vector<1x2x32xf32> to vector<1xf32>
      %38 = vector.shape_cast %37 : vector<1xf32> to vector<1x1x1xf32>
      %cst_17 = arith.constant 6.400000e+01 : f32
      %39 = vector.broadcast %cst_17 : f32 to vector<1x1x1xf32>
      %40 = arith.divf %38, %39 : vector<1x1x1xf32>
      %cst_18 = arith.constant 9.99999997E-7 : f32
      %41 = vector.broadcast %cst_18 : f32 to vector<1x1x1xf32>
      %42 = arith.addf %40, %41 : vector<1x1x1xf32>
      %43 = math.rsqrt %42 : vector<1x1x1xf32>
      %44 = vector.broadcast %43 : vector<1x1x1xf32> to vector<1x2x32xf32>
      %45 = arith.mulf %35, %44 : vector<1x2x32xf32>
      %c0_19 = arith.constant 0 : index
      %c0_20 = arith.constant 0 : index
      %46 = vector.load %arg3[%c0_19, %c0_20] : memref<2x32xf32, #tpu.memory_space<vmem>>, vector<2x32xf32>
      %c0_21 = arith.constant 0 : index
      %c0_22 = arith.constant 0 : index
      %47 = vector.load %arg4[%c0_21, %c0_22] : memref<2x32xf32, #tpu.memory_space<vmem>>, vector<2x32xf32>
      %48 = vector.shape_cast %46 : vector<2x32xf32> to vector<1x2x32xf32>
      %49 = arith.mulf %45, %48 : vector<1x2x32xf32>
      %50 = vector.shape_cast %47 : vector<2x32xf32> to vector<1x2x32xf32>
      %51 = arith.addf %49, %50 : vector<1x2x32xf32>
      %c0_23 = arith.constant 0 : index
      %c0_24 = arith.constant 0 : index
      %c0_25 = arith.constant 0 : index
      %52 = vector.load %arg7[%c0_23, %c0_24, %c0_25] : memref<1x8x32xf32, #tpu.memory_space<vmem>>, vector<1x2x32xf32>
      tpu.vector_store %arg7[%c0_23, %c0_24, %c0_25], %51 {strides = array<i32>} : memref<1x8x32xf32, #tpu.memory_space<vmem>>, vector<1x2x32xf32>,
    } else {
    }
    return
  }
  func.func @transform_0(%arg0: i32, %arg1: i32) -> (i32, i32, i32) {
    %c0_i32 = arith.constant 0 : i32
    %c0_i32_0 = arith.constant 0 : i32
    return %arg0, %arg1, %c0_i32 : i32, i32, i32
  }
  func.func @transform_1(%arg0: i32, %arg1: i32) -> (i32, i32) {
    %c0_i32 = arith.constant 0 : i32
    %c0_i32_0 = arith.constant 0 : i32
    %c0_i32_1 = arith.constant 0 : i32
    return %c0_i32, %c0_i32_0 : i32, i32
  }
  func.func @transform_2(%arg0: i32, %arg1: i32) -> (i32, i32) {
    %c0_i32 = arith.constant 0 : i32
    %c0_i32_0 = arith.constant 0 : i32
    %c0_i32_1 = arith.constant 0 : i32
    return %c0_i32, %c0_i32_0 : i32, i32
  }
  func.func @transform_3(%arg0: i32, %arg1: i32) -> (i32, i32) {
    %c0_i32 = arith.constant 0 : i32
    %c0_i32_0 = arith.constant 0 : i32
    %c0_i32_1 = arith.constant 0 : i32
    return %c0_i32, %c0_i32_0 : i32, i32
  }
  func.func @transform_4(%arg0: i32, %arg1: i32) -> (i32, i32) {
    %c0_i32 = arith.constant 0 : i32
    %c0_i32_0 = arith.constant 0 : i32
    %c0_i32_1 = arith.constant 0 : i32
    return %c0_i32, %c0_i32_0 : i32, i32
  }
  func.func @transform_5(%arg0: i32, %arg1: i32) -> (i32, i32, i32) {
    %c0_i32 = arith.constant 0 : i32
    %c0_i32_0 = arith.constant 0 : i32
    return %arg0, %arg1, %c0_i32 : i32, i32, i32
  }
}

</mosaic_0001>

<llo_original>
// kernel: tpu_custom_call.1
$region0: #{tpu_custom_call.1}
  #allocation0 [shape = 'u32[]', space=smem, size = 0x4, offset = 0x4, fixed_abs, tag = 'smem constant byte address 0x4 - core index']
  #allocation1 [shape = 'u32[144,128]{1,0:T(1,128)}', space=vmem, size = 0x12000, scoped, tag = 'internal scratch']
  %s0 = inlined_call_operand.hbm [shape: f32[2,8,32], index: 0, kind: input, shape index: {}]
  %s1 = inlined_call_operand.hbm [shape: f32[2,32], index: 1, kind: input, shape index: {}]
  %s2 = inlined_call_operand.vmem [shape: f32[2,32], index: 2, kind: input, shape index: {}]
  %s3 = inlined_call_operand.vmem [shape: f32[1,32], index: 3, kind: input, shape index: {}]
  %s4 = inlined_call_operand.vmem [shape: f32[1,32], index: 4, kind: input, shape index: {}]
  %s5 = inlined_call_operand.hbm [shape: f32[2,8,32], index: 5, kind: output, shape index: {}]
  %s6 = sld [smem:[#allocation0]]
  $region65: #{tpu_custom_call.1} parent=0
    _
  %s8 = ssub.s32 1, %s6
  %s9 = scalar_select 0, %s8, %s6
  $region1: #{tpu_custom_call.1} parent=0
    #allocation2 [shape = 'u8[8192]{0}', space=vmem, size = 0x2000, scoped, tag = 'input window, operand 0']
    #allocation3 [shape = 's32[2]{0}', space=sflag, size = 0x8, scoped, tag = 'scoped memory for tpu_custom_call.1']
    #allocation4 [shape = 's32[2]{0}', space=sflag, size = 0x8, scoped, tag = 'scoped memory for tpu_custom_call.1']
    #allocation5 [shape = 'u8[1024]{0}', space=vmem, size = 0x400, scoped, tag = 'input window, operand 1, single buffered']
    #allocation6 [shape = 's32[1]{0}', space=sflag, size = 0x4, scoped, tag = 'scoped memory for tpu_custom_call.1']
    #allocation7 [shape = 'u8[8192]{0}', space=vmem, size = 0x2000, scoped, tag = 'output window, operand 0']
    %10 = vsyncpa [#allocation3], 0
    %s11 = scalar_lea.sflag [#allocation3], 1
    %12 = vsyncpa %s11, 0
    %13 = vsyncpa [#allocation6], 0
    %14 = vsyncpa [#allocation4], 0
    %s15 = scalar_lea.sflag [#allocation4], 1
    %16 = vsyncpa %s15, 0
    loop: start=0, step=1, limit=4
    $region2: #{tpu_custom_call.1} parent=1 // loop_pre_header
      _
    $region3: #{tpu_custom_call.1} parent=1 // loop_header
      %s18 = sphi 0, %s22
      %p19 = scmp.ge.s32.totalorder %s18, 4
      %s25 = sphi 0, %s37
      %s26 = sphi 0, %s33
      %s27 = sphi 0, %s25
      %s28 = sphi 0, %s26
      %s29 = sphi 0, %s27
      %s30 = sphi 0, %s28
      %s42 = sphi 0, %s44
      %s45 = sphi 0, %s42
      %s46 = sphi 0, %s45
      %s62 = sphi 0, %s46
      %s66 = sphi 0, %s66
      %s68 = sphi 0, %s66
      %s69 = sphi 0, %s68
      %s83 = sphi 0, %s69
      %s87 = sphi 0, %s87
      %s89 = sphi 0, %s87
      %s90 = sphi 0, %s89
      %s104 = sphi 0, %s90
      %s108 = sphi 0, %s108
      %s110 = sphi 0, %s108
      %s111 = sphi 0, %s110
      %s125 = sphi 0, %s111
      %s129 = sphi 0, %s129
      %s131 = sphi 0, %s129
      %s132 = sphi 0, %s131
      %s146 = sphi 0, %s132
      %s154 = sphi 0, %s156
      %s157 = sphi 0, %s154
      %s158 = sphi 0, %s157
      %s174 = sphi 0, %s158
    $region4: #{tpu_custom_call.1} parent=1 // loop_header_branch
      %21 = sbr.rel (%p19) target = $region8
    $region5: #{tpu_custom_call.1} parent=1 // loop_body
      %s23 = ssub.s32 %s18, 1
      %s24 = ssub.s32 %s18, 2
      %s31 = sadd.s32 1, %s26
      %p32 = scmp.ge.s32.totalorder %s31, 1
      %s33 = scalar_select %p32, 0, %s31
      %s34 = sadd.s32 1, %s25
      %s35 = scalar_select %p32, %s34, %s25
      %p36 = scmp.ge.s32.totalorder %s35, 2
      %s37 = scalar_select %p36, 0, %s35
      %s38 = ssub.s32 %s25, %s37
      %s39 = ssub.s32 %s26, %s33
      %s40 = sor.u32 %s38, %s39
      %p41 = scmp.eq.s32.totalorder %s40, 0
      %s43 = sadd.s32 %s42, 1
      %s44 = scalar_select %p41, %s42, %s43
      %p47 = pneg %p41
      %p48 = scmp.eq.s32.totalorder %s18, 1
      %p49 = por %p47, %p48
      %p50 = scmp.ne.s32.totalorder %s42, %s45
      %p51 = scmp.eq.s32.totalorder %s18, 0
      %p52 = por %p50, %p51
      %p53 = scmp.ne.s32.totalorder %s42, %s45
      %p54 = scmp.eq.s32.totalorder %s23, 1
      %p55 = por %p53, %p54
      %p56 = scmp.ne.s32.totalorder %s45, %s46
      %p57 = scmp.eq.s32.totalorder %s23, 0
      %p58 = por %p56, %p57
      %p59 = scmp.ne.s32.totalorder %s45, %s46
      %p60 = scmp.eq.s32.totalorder %s24, 1
      %p61 = por %p59, %p60
      %p63 = scmp.ne.s32.totalorder %s46, %s62
      %p64 = scmp.eq.s32.totalorder %s24, 0
      %p65 = por %p63, %p64
      %s67 = sadd.s32 %s66, 1
      %p70 = scmp.eq.s32.totalorder %s18, 1
      %p71 = scmp.ne.s32.totalorder %s66, %s68
      %p72 = scmp.eq.s32.totalorder %s18, 0
      %p73 = por %p71, %p72
      %p74 = scmp.ne.s32.totalorder %s66, %s68
      %p75 = scmp.eq.s32.totalorder %s23, 1
      %p76 = por %p74, %p75
      %p77 = scmp.ne.s32.totalorder %s68, %s69
      %p78 = scmp.eq.s32.totalorder %s23, 0
      %p79 = por %p77, %p78
      %p80 = scmp.ne.s32.totalorder %s68, %s69
      %p81 = scmp.eq.s32.totalorder %s24, 1
      %p82 = por %p80, %p81
      %p84 = scmp.ne.s32.totalorder %s69, %s83
      %p85 = scmp.eq.s32.totalorder %s24, 0
      %p86 = por %p84, %p85
      %s88 = sadd.s32 %s87, 1
      %p91 = scmp.eq.s32.totalorder %s18, 1
      %p92 = scmp.ne.s32.totalorder %s87, %s89
      %p93 = scmp.eq.s32.totalorder %s18, 0
      %p94 = por %p92, %p93
      %p95 = scmp.ne.s32.totalorder %s87, %s89
      %p96 = scmp.eq.s32.totalorder %s23, 1
      %p97 = por %p95, %p96
      %p98 = scmp.ne.s32.totalorder %s89, %s90
      %p99 = scmp.eq.s32.totalorder %s23, 0
      %p100 = por %p98, %p99
      %p101 = scmp.ne.s32.totalorder %s89, %s90
      %p102 = scmp.eq.s32.totalorder %s24, 1
      %p103 = por %p101, %p102
      %p105 = scmp.ne.s32.totalorder %s90, %s104
      %p106 = scmp.eq.s32.totalorder %s24, 0
      %p107 = por %p105, %p106
      %s109 = sadd.s32 %s108, 1
      %p112 = scmp.eq.s32.totalorder %s18, 1
      %p113 = scmp.ne.s32.totalorder %s108, %s110
      %p114 = scmp.eq.s32.totalorder %s18, 0
      %p115 = por %p113, %p114
      %p116 = scmp.ne.s32.totalorder %s108, %s110
      %p117 = scmp.eq.s32.totalorder %s23, 1
      %p118 = por %p116, %p117
      %p119 = scmp.ne.s32.totalorder %s110, %s111
      %p120 = scmp.eq.s32.totalorder %s23, 0
      %p121 = por %p119, %p120
      %p122 = scmp.ne.s32.totalorder %s110, %s111
      %p123 = scmp.eq.s32.totalorder %s24, 1
      %p124 = por %p122, %p123
      %p126 = scmp.ne.s32.totalorder %s111, %s125
      %p127 = scmp.eq.s32.totalorder %s24, 0
      %p128 = por %p126, %p127
      %s130 = sadd.s32 %s129, 1
      %p133 = scmp.eq.s32.totalorder %s18, 1
      %p134 = scmp.ne.s32.totalorder %s129, %s131
      %p135 = scmp.eq.s32.totalorder %s18, 0
      %p136 = por %p134, %p135
      %p137 = scmp.ne.s32.totalorder %s129, %s131
      %p138 = scmp.eq.s32.totalorder %s23, 1
      %p139 = por %p137, %p138
      %p140 = scmp.ne.s32.totalorder %s131, %s132
      %p141 = scmp.eq.s32.totalorder %s23, 0
      %p142 = por %p140, %p141
      %p143 = scmp.ne.s32.totalorder %s131, %s132
      %p144 = scmp.eq.s32.totalorder %s24, 1
      %p145 = por %p143, %p144
      %p147 = scmp.ne.s32.totalorder %s132, %s146
      %p148 = scmp.eq.s32.totalorder %s24, 0
      %p149 = por %p147, %p148
      %s150 = ssub.s32 %s25, %s37
      %s151 = ssub.s32 %s26, %s33
      %s152 = sor.u32 %s150, %s151
      %p153 = scmp.eq.s32.totalorder %s152, 0
      %s155 = sadd.s32 %s154, 1
      %s156 = scalar_select %p153, %s154, %s155
      %p159 = pneg %p153
      %p160 = scmp.eq.s32.totalorder %s18, 1
      %p161 = por %p159, %p160
      %p162 = scmp.ne.s32.totalorder %s154, %s157
      %p163 = scmp.eq.s32.totalorder %s18, 0
      %p164 = por %p162, %p163
      %p165 = scmp.ne.s32.totalorder %s154, %s157
      %p166 = scmp.eq.s32.totalorder %s23, 1
      %p167 = por %p165, %p166
      %p168 = scmp.ne.s32.totalorder %s157, %s158
      %p169 = scmp.eq.s32.totalorder %s23, 0
      %p170 = por %p168, %p169
      %p171 = scmp.ne.s32.totalorder %s157, %s158
      %p172 = scmp.eq.s32.totalorder %s24, 1
      %p173 = por %p171, %p172
      %p175 = scmp.ne.s32.totalorder %s158, %s174
      %p176 = scmp.eq.s32.totalorder %s24, 0
      %p177 = por %p175, %p176
      %p178 = scmp.le.s32.totalorder 1, %s18
      %p179 = scmp.lt.s32.totalorder %s18, 3
      %p180 = pnand %p178, %p179
      %p181 = pneg %p180
      // Predicated region
      $region9: #{tpu_custom_call.1} parent=5 // pred_check
        _
      $region10: #{tpu_custom_call.1} parent=5 // pred_check_branch
        %183 = sbr.rel (%p180) target = $region12
      $region11: #{tpu_custom_call.1} parent=5 // pred_region
        %s184 = ssub.s32 %s18, 1
        // Predicated region
        $region13: #{tpu_custom_call.1} parent=11 // pred_check
          %p185 = pneg %p79
        $region14: #{tpu_custom_call.1} parent=11 // pred_check_branch
          %187 = sbr.rel (%p185) target = $region16
        $region15: #{tpu_custom_call.1} parent=11 // pred_region
          %s189 = ssub.s32 32, 32
          %190 = vsyncadd [#allocation6], %s189
          %s192 = sshll.u32 [#allocation5], 4
          %s193 = int_to_ptr.vmem [resolvable:$true] %s192
          %195 = dma.hbm_to_vmem [thread:$0]  %s1, 32, %s193, [#allocation6]
        $region16: #{tpu_custom_call.1} parent=11 // pred_fallthru
          _
        // Predicated region
        $region17: #{tpu_custom_call.1} parent=11 // pred_check
          %p196 = pneg %p100
        $region18: #{tpu_custom_call.1} parent=11 // pred_check_branch
          %198 = sbr.rel (%p196) target = $region20
        $region19: #{tpu_custom_call.1} parent=11 // pred_region
          _
        $region20: #{tpu_custom_call.1} parent=11 // pred_fallthru
          _
        // Predicated region
        $region21: #{tpu_custom_call.1} parent=11 // pred_check
          %p199 = pneg %p121
        $region22: #{tpu_custom_call.1} parent=11 // pred_check_branch
          %201 = sbr.rel (%p199) target = $region24
        $region23: #{tpu_custom_call.1} parent=11 // pred_region
          _
        $region24: #{tpu_custom_call.1} parent=11 // pred_fallthru
          _
        // Predicated region
        $region25: #{tpu_custom_call.1} parent=11 // pred_check
          %p202 = pneg %p142
        $region26: #{tpu_custom_call.1} parent=11 // pred_check_branch
          %204 = sbr.rel (%p202) target = $region28
        $region27: #{tpu_custom_call.1} parent=11 // pred_region
          _
        $region28: #{tpu_custom_call.1} parent=11 // pred_fallthru
          _
      $region12: #{tpu_custom_call.1} parent=5 // pred_fallthru
        _
      %p205 = scmp.lt.s32.totalorder %s18, 2
      // Predicated region
      $region29: #{tpu_custom_call.1} parent=5 // pred_check
        %p206 = pneg %p205
      $region30: #{tpu_custom_call.1} parent=5 // pred_check_branch
        %208 = sbr.rel (%p206) target = $region32
      $region31: #{tpu_custom_call.1} parent=5 // pred_region
        // Predicated region
        $region33: #{tpu_custom_call.1} parent=31 // pred_check
          %p209 = pneg %p52
        $region34: #{tpu_custom_call.1} parent=31 // pred_check_branch
          %211 = sbr.rel (%p209) target = $region36
        $region35: #{tpu_custom_call.1} parent=31 // pred_region
          %s212 = sand.u32 %s42, 1
          %s213 = scalar_lea.sflag [#allocation3], %s212
          %s214 = sand.u32 %s42, 1
          %s215 = smul.addr %s214, 8
          %s216 = scalar_lea.vmem [#allocation2], %s215
          %s218 = ssub.s32 128, 128
          %219 = vsyncadd %s213, %s218
          %s220 = sadd.s32 %s26, %s25
          %s221 = smul.addr %s220, 128
          %s222 = scalar_lea.hbm %s0, %s221
          %s224 = sshll.u32 %s216, 4
          %s225 = int_to_ptr.vmem [resolvable:$true] %s224
          %227 = dma.hbm_to_vmem [thread:$0]  %s222, 128, %s225, %s213
        $region36: #{tpu_custom_call.1} parent=31 // pred_fallthru
          _
      $region32: #{tpu_custom_call.1} parent=5 // pred_fallthru
        _
      %p228 = scmp.le.s32.totalorder 1, %s18
      %p229 = scmp.lt.s32.totalorder %s18, 3
      %p230 = pnand %p228, %p229
      %p231 = pneg %p230
      // Predicated region
      $region37: #{tpu_custom_call.1} parent=5 // pred_check
        _
      $region38: #{tpu_custom_call.1} parent=5 // pred_check_branch
        %233 = sbr.rel (%p230) target = $region40
      $region39: #{tpu_custom_call.1} parent=5 // pred_region
        %s234 = ssub.s32 %s18, 1
        %s235 = sand.u32 %s45, 1
        %s236 = scalar_lea.sflag [#allocation3], %s235
        %s237 = sand.u32 %s45, 1
        %s238 = smul.addr %s237, 8
        %s239 = scalar_lea.vmem [#allocation2], %s238
        // Predicated region
        $region41: #{tpu_custom_call.1} parent=39 // pred_check
          %p240 = pneg %p58
        $region42: #{tpu_custom_call.1} parent=39 // pred_check_branch
          %242 = sbr.rel (%p240) target = $region44
        $region43: #{tpu_custom_call.1} parent=39 // pred_region
          %243 = dma.done %s236, 128
        $region44: #{tpu_custom_call.1} parent=39 // pred_fallthru
          _
        // Predicated region
        $region45: #{tpu_custom_call.1} parent=39 // pred_check
          %p244 = pneg %p79
        $region46: #{tpu_custom_call.1} parent=39 // pred_check_branch
          %246 = sbr.rel (%p244) target = $region48
        $region47: #{tpu_custom_call.1} parent=39 // pred_region
          %247 = dma.done [#allocation6], 32
        $region48: #{tpu_custom_call.1} parent=39 // pred_fallthru
          _
        %s248 = sand.u32 %s45, 1
        %s249 = scalar_lea.sflag [#allocation3], %s248
        %s250 = sand.u32 %s45, 1
        %s251 = smul.addr %s250, 8
        %s252 = scalar_lea.vmem [#allocation2], %s251
        %p253 = pneg %p58
        %p254 = pneg %p55
        %p255 = pneg %p79
        %p256 = pneg %p76
        %p257 = pneg %p100
        %p258 = pneg %p97
        %p259 = pneg %p121
        %p260 = pneg %p118
        %p261 = pneg %p142
        %p262 = pneg %p139
        %p263 = pneg %p170
        %p264 = pneg %p167
        %s265 = sand.u32 %s157, 1
        %s266 = scalar_lea.sflag [#allocation4], %s265
        %s267 = sand.u32 %s157, 1
        %s268 = smul.addr %s267, 8
        %s269 = scalar_lea.vmem [#allocation7], %s268
        %v270 = vld [vmem:[%s239] sm:$0xff]
        %vm271 = vcmask 261120
        %v272 = vsel %vm271, %v270, 0.0
        %273 = vadd.xlane.f32.xlu0 %v272
        %v274 = vpop.xlane.xlu0 %273
        %v275 = vrcp.pop 32.0
        %v276 = vmul.f32 %v274, %v275
        %v277 = vsub.f32 %v270, %v276
        %v278 = vmul.f32 %v277, %v277
        %v279 = vsel %vm271, %v278, 0.0
        %280 = vadd.xlane.f32.xlu0 %v279
        %v281 = vpop.xlane.xlu0 %280
        %v282 = vmul.f32 %v281, %v275
        %v283 = vadd.f32 %v282, 1e-06
        %v284 = vrsqrt.pop %v283
        %v285 = vld [vmem:[%s3] sm:$0x1]
        %v286 = vld [vmem:[%s4] sm:$0x1]
        %v287 = vmul.f32 %v277, %v284
        %v289 = vlaneseq
        %v290 = vshrl.u32 %v289, 7
        %v291 = vsub.s32 0, %v290
        %v292 = vrot.slane %v285, %v291
        %v294 = vmul.f32 %v287, %v292
        %v296 = vlaneseq
        %v297 = vshrl.u32 %v296, 7
        %v298 = vsub.s32 0, %v297
        %v299 = vrot.slane %v286, %v298
        %v301 = vadd.f32 %v294, %v299
        %302 = vst.msk [vmem:[%s269] sm:$0xff] %vm271, %v301
        %p303 = scmp.eq.s32.totalorder %s28, 0
        // Predicated region
        $region49: #{tpu_custom_call.1} parent=39 // pred_check
          %p304 = pneg %p303
        $region50: #{tpu_custom_call.1} parent=39 // pred_check_branch
          %306 = sbr.rel (%p304) target = $region52
        $region51: #{tpu_custom_call.1} parent=39 // pred_region
          %vm307 = vcmask 254976
          %v308 = vsel %vm307, %v270, 0.0
          %309 = vadd.xlane.f32.xlu0 %v308
          %v310 = vpop.xlane.xlu0 %309
          %v311 = vrot.slane %v310, 4
          %v312 = vadd.f32 %v310, %v311
          %v313 = vrot.slane %v312, 2
          %v314 = vadd.f32 %v312, %v313
          %v315 = vrot.slane %v314, 1
          %v316 = vadd.f32 %v314, %v315
          %v317 = vrcp.pop 64.0
          %v318 = vmul.f32 %v316, %v317
          %v319 = vsub.f32 %v270, %v318
          %v320 = vmul.f32 %v319, %v319
          %v321 = vsel %vm307, %v320, 0.0
          %322 = vadd.xlane.f32.xlu0 %v321
          %v323 = vpop.xlane.xlu0 %322
          %v324 = vrot.slane %v323, 4
          %v325 = vadd.f32 %v323, %v324
          %v326 = vrot.slane %v325, 2
          %v327 = vadd.f32 %v325, %v326
          %v328 = vrot.slane %v327, 1
          %v329 = vadd.f32 %v327, %v328
          %v330 = vmul.f32 %v329, %v317
          %v331 = vadd.f32 %v330, 1e-06
          %v332 = vrsqrt.pop %v331
          %v333 = vmul.f32 %v319, %v332
          %v334 = vld [vmem:[#allocation5] sm:$0x3]
          %v335 = vld [vmem:[%s2] sm:$0x3]
          %v336 = vmul.f32 %v333, %v334
          %v337 = vadd.f32 %v336, %v335
          %338 = vst.msk [vmem:[%s269] sm:$0x3] %vm307, %v337
        $region52: #{tpu_custom_call.1} parent=39 // pred_fallthru
          _
        %s339 = sand.u32 %s157, 1
        %s340 = scalar_lea.sflag [#allocation4], %s339
        %s341 = sand.u32 %s157, 1
        %s342 = smul.addr %s341, 8
        %s343 = scalar_lea.vmem [#allocation7], %s342
        // Predicated region
        $region53: #{tpu_custom_call.1} parent=39 // pred_check
          %p344 = pneg %p167
        $region54: #{tpu_custom_call.1} parent=39 // pred_check_branch
          %346 = sbr.rel (%p344) target = $region56
        $region55: #{tpu_custom_call.1} parent=39 // pred_region
          %s348 = ssub.s32 128, 128
          %349 = vsyncadd %s340, %s348
          %s350 = sadd.s32 %s28, %s27
          %s351 = smul.addr %s350, 128
          %s352 = scalar_lea.hbm %s5, %s351
          %s354 = sshll.u32 %s343, 4
          %s355 = int_to_ptr.vmem [resolvable:$true] %s354
          %357 = dma.vmem_to_hbm [thread:$0]  %s355, 128, %s352, %s340
        $region56: #{tpu_custom_call.1} parent=39 // pred_fallthru
          _
      $region40: #{tpu_custom_call.1} parent=5 // pred_fallthru
        _
      %p358 = scmp.le.s32.totalorder 2, %s18
      // Predicated region
      $region57: #{tpu_custom_call.1} parent=5 // pred_check
        %p359 = pneg %p358
      $region58: #{tpu_custom_call.1} parent=5 // pred_check_branch
        %361 = sbr.rel (%p359) target = $region60
      $region59: #{tpu_custom_call.1} parent=5 // pred_region
        %s362 = ssub.s32 %s18, 2
        // Predicated region
        $region61: #{tpu_custom_call.1} parent=59 // pred_check
          %p363 = pneg %p173
        $region62: #{tpu_custom_call.1} parent=59 // pred_check_branch
          %365 = sbr.rel (%p363) target = $region64
        $region63: #{tpu_custom_call.1} parent=59 // pred_region
          %s366 = sand.u32 %s158, 1
          %s367 = scalar_lea.sflag [#allocation4], %s366
          %s368 = sand.u32 %s158, 1
          %s369 = smul.addr %s368, 8
          %s370 = scalar_lea.vmem [#allocation7], %s369
          %371 = dma.done %s367, 128
        $region64: #{tpu_custom_call.1} parent=59 // pred_fallthru
          _
      $region60: #{tpu_custom_call.1} parent=5 // pred_fallthru
        _
    $region6: #{tpu_custom_call.1} parent=1 // loop_footer
      %s22 = sadd.s32 1, %s18
    $region7: #{tpu_custom_call.1} parent=1 // loop_footer_branch
      %17 = sbr.rel target = $region3
    $region8: #{tpu_custom_call.1} parent=1 // loop_exit
      _
    %372 = vsyncpa [#allocation3], 1
    %s373 = scalar_lea.sflag [#allocation3], 1
    %374 = vsyncpa %s373, 1
    %375 = vsyncpa [#allocation6], 1
    %376 = vsyncpa [#allocation4], 1
    %s377 = scalar_lea.sflag [#allocation4], 1
    %378 = vsyncpa %s377, 1

</llo_original>
